<compile_context>
chip_gen: v7x
topology: tpu7x:2x2x1
jax: 0.10.0
libtpu: 0.0.40
codegen_flags: <defaults>
</compile_context>

<pallas_src>
import jax
import jax.numpy as jnp
from jax.experimental import pallas as pl
from jax.experimental.pallas import tpu as pltpu

_LANE = 128


def _cdiv(a, b):
    return -(-a // b)


def _round_up(x, m):
    return _cdiv(x, m) * m


def _sublane(itemsize):
    # f32 -> 8, bf16 -> 16, int8/fp8 -> 32 rows per vreg sublane pack.
    return max(8, 32 // max(itemsize, 1))


def _flat_dim(shape):
    flat = 1
    for d in shape[1:]:
        flat *= d
    return flat


# ---------------------------------------------------------------------------
# Recommended production path: the flatten is metadata-only.
# ---------------------------------------------------------------------------
def flatten(x):
    """torch's x.view(x.size(0), -1): a free, metadata-only reshape."""
    return x.reshape(x.shape[0], _flat_dim(x.shape))


# ---------------------------------------------------------------------------
# Kernel 1 (default): whole-array HBM->HBM DMA copy. No VMEM bounce.
# ---------------------------------------------------------------------------
def _hbm_copy_kernel(x_hbm_ref, o_hbm_ref, sem):
    # One DMA descriptor covering the full contiguous array: the DMA engine
    # streams HBM->HBM at memory rate; the TensorCore does no vld/vst work.
    copy = pltpu.make_async_copy(x_hbm_ref, o_hbm_ref, sem)
    copy.start()
    copy.wait()


def flatten_pallas(x):
    """Flatten via a single HBM->HBM DMA (materializing kernel variant)."""
    n = x.shape[0]
    flat = _flat_dim(x.shape)
    itemsize = jnp.dtype(x.dtype).itemsize
    x2 = x.reshape(n, flat)  # metadata-only; a bitcast under jit

    return pl.pallas_call(
        _hbm_copy_kernel,
        out_shape=jax.ShapeDtypeStruct((n, flat), x.dtype),
        in_specs=[pl.BlockSpec(memory_space=pl.ANY)],
        out_specs=pl.BlockSpec(memory_space=pl.ANY),
        scratch_shapes=[pltpu.SemaphoreType.DMA],
        cost_estimate=pl.CostEstimate(
            flops=0, transcendentals=0,
            bytes_accessed=2 * n * flat * itemsize),
    )(x2)


# ---------------------------------------------------------------------------
# Kernel 2: tiled lane-dense VMEM copy (fixed tile selection).
# ---------------------------------------------------------------------------
def _copy_kernel(x_ref, o_ref):
    o_ref[...] = x_ref[...]


def _choose_tiles(n, flat, itemsize, tile_budget_bytes):
    """Pick a (tn, tf) block shape.

    Guarantees:
      * tf is a multiple of 128 or equals `flat`; tn is a multiple of the
        dtype sublane pack or equals `n` (the (8,128) rule on block_shape);
      * the *padded* tile never exceeds tile_budget_bytes, so double-buffered
        in+out copies stay inside scoped VMEM on v5e/v6e/v7x;
      * full rows are preferred (one fully contiguous HBM region per tile).
    """
    sub = _sublane(itemsize)
    flat_pad = _round_up(flat, _LANE)
    n_pad = _round_up(n, sub)
    budget_elems = max(tile_budget_bytes // itemsize, sub * _LANE)

    if sub * flat_pad <= budget_elems:
        # Full rows fit within the budget: keep tf = flat and grow the batch.
        tf = flat
        max_tn = (budget_elems // flat_pad) // sub * sub
        tn = n if n_pad <= max_tn else max_tn
    else:
        # Rows too long: a few rows per tile, split the flat axis into large
        # lane-dense chunks (only the ragged last column pays masked stores).
        tn = n if n_pad <= sub else sub
        tf = min((budget_elems // sub) // _LANE * _LANE, flat_pad)
    return tn, tf


def _split_for_parallelism(n, flat, tn, tf, itemsize, min_programs=4):
    """Shrink tiles for mid-size inputs so both v7x TensorCores get work."""
    sub = _sublane(itemsize)
    if n * flat * itemsize < (1 << 20):   # tiny arrays: one step is cheapest
        return tn, tf
    while _cdiv(n, tn) * _cdiv(flat, tf) < min_programs:
        if tn > sub:                       # split batch first: tiles stay
            tn = max(sub, _round_up(tn // 2, sub))   # contiguous full rows
        elif tf > _LANE:
            tf = max(_LANE, _round_up(tf // 2, _LANE))
        else:
            break
    return tn, tf


def flatten_pallas_tiled(x, *, donate=False, tile_budget_bytes=4 << 20):
    """Flatten via a tiled VMEM memcpy kernel.

    donate=True aliases the output onto the input buffer
    (input_output_aliases={0: 0}); the caller must not reuse `x` afterwards.
    """
    n = x.shape[0]
    flat = _flat_dim(x.shape)
    itemsize = jnp.dtype(x.dtype).itemsize
    x2 = x.reshape(n, flat)  # metadata-only flatten; kernel is a pure memcpy

    tn, tf = _choose_tiles(n, flat, itemsize, tile_budget_bytes)
    tn, tf = _split_for_parallelism(n, flat, tn, tf, itemsize)
    grid = (_cdiv(n, tn), _cdiv(flat, tf))

    extra = {"input_output_aliases": {0: 0}} if donate else {}
    return pl.pallas_call(
        _copy_kernel,
        out_shape=jax.ShapeDtypeStruct((n, flat), x.dtype),
        grid=grid,
        in_specs=[pl.BlockSpec((tn, tf), lambda i, j: (i, j))],
        out_specs=pl.BlockSpec((tn, tf), lambda i, j: (i, j)),
        compiler_params=pltpu.CompilerParams(
            # Both axes independent -> megacore sharding on v7x; neutral
            # on v5e/v6e.  A memcpy needs no deeper Buffered(n) pipelining.
            dimension_semantics=("parallel", "parallel"),
            # 2x(in+out) buffers at <=4 MiB tiles = <=16 MiB; 32 MiB scoped
            # limit leaves ample headroom under v7x's 64 MiB physical VMEM.
            vmem_limit_bytes=32 << 20,
        ),
        cost_estimate=pl.CostEstimate(
            flops=0, transcendentals=0,
            bytes_accessed=2 * n * flat * itemsize),
        **extra,
    )(x2)


if __name__ == "__main__":
    key = jax.random.PRNGKey(0)
    x = jax.random.normal(key, (2, 4, 16, 16), dtype=jnp.float32)
    ref = x.reshape(x.shape[0], -1)

    # Default kernel: HBM->HBM DMA copy.
    out_dma = flatten_pallas(x)
    jax.block_until_ready(out_dma)
    assert out_dma.shape == (2, 4 * 16 * 16), out_dma.shape
    assert out_dma.dtype == x.dtype
    assert jnp.array_equal(out_dma, ref)

    # Tiled VMEM-copy kernel (fixed tile selection).
    out_tiled = flatten_pallas_tiled(x)
    jax.block_until_ready(out_tiled)
    assert out_tiled.shape == (2, 4 * 16 * 16), out_tiled.shape
    assert out_tiled.dtype == x.dtype
    assert jnp.array_equal(out_tiled, ref)

    # Non-128-multiple trailing dims: full-extent blocks, still legal.
    x_odd = jax.random.normal(jax.random.PRNGKey(0), (3, 5, 7, 11),
                              dtype=jnp.float32)
    out_odd = flatten_pallas_tiled(x_odd)
    jax.block_until_ready(out_odd)
    assert jnp.array_equal(out_odd, x_odd.reshape(3, -1))

    print("KERNEL_OK")
</pallas_src>

<mosaic_0001>
module attributes {stable_mosaic.version = 11 : i64} {
  func.func @_hbm_copy_kernel(%arg0: memref<2x1024xf32, #tpu.memory_space<any>>, %arg1: memref<2x1024xf32, #tpu.memory_space<any>>, %arg2: memref<!tpu.dma_semaphore, #tpu.memory_space<semaphore_mem>>) attributes {dimension_semantics = [], scalar_prefetch = 0 : i64, scratch_operands = 1 : i64, tpu.core_type = #tpu.core_type<tc>} {
    tpu.enqueue_dma source(%arg0 : memref<2x1024xf32, #tpu.memory_space<any>>) target(%arg1 : memref<2x1024xf32, #tpu.memory_space<any>>) target_semaphore(%arg2 : memref<!tpu.dma_semaphore, #tpu.memory_space<semaphore_mem>>)
    tpu.wait_dma2 semaphore(%arg2 : memref<!tpu.dma_semaphore, #tpu.memory_space<semaphore_mem>>) src(%arg0 : memref<2x1024xf32, #tpu.memory_space<any>>) dst(%arg1 : memref<2x1024xf32, #tpu.memory_space<any>>)
    return
  }
}

</mosaic_0001>

<llo_original>
// kernel: tpu_custom_call.1
$region0: #{tpu_custom_call.1}
  #allocation0 [shape = 'u32[]', space=smem, size = 0x4, offset = 0x4, fixed_abs, tag = 'smem constant byte address 0x4 - core index']
  #allocation1 [shape = 'u32[144,128]{1,0:T(1,128)}', space=vmem, size = 0x12000, scoped, tag = 'internal scratch']
  #allocation2 [shape = 's32[1]{0}', space=sflag, size = 0x4, scoped, tag = 'scratch operand']
  #allocation3 [shape = 's32[]', space=sflag, size = 0x4, offset = 0, fixed_abs, tag = 'sflag constant byte address 0x0 - dummy sync flag']
  #allocation4 [shape = 'u32[0]{0}', space=smem, size = 0, offset = 0, fixed_abs, tag = 'smem constant byte address 0x0 - null']
  %s0 = inlined_call_operand.hbm [shape: f32[2,1024], index: 0, kind: input, shape index: {}]
  %s1 = inlined_call_operand.hbm [shape: f32[2,1024], index: 1, kind: output, shape index: {}]
  %s2 = sld [smem:[#allocation0]]
  $region2: #{tpu_custom_call.1} parent=0
    _
  %s4 = ssub.s32 1, %s2
  %s5 = scalar_select 0, %s4, %s2
  %s7 = sshll.u32 1, 14
  %s8 = sxor.u32 4294967295, %s7
  %s11 = sshll.u32 3, 24
  %s12 = sxor.u32 4294967295, %s11
  %s13 = sand.u32 0, %s12
  %s15 = sor.u32 %s13, 0
  %18 = dma.general %s0, 256, %s1, [#allocation2], [#allocation3], [#allocation4], %s15, 0
  %s19 = smul.u32 2, 1
  %s20 = smul.u32 %s19, 8
  %s21 = sshll.u32 %s20, 4
  %22 = dma.done [#allocation2], %s21
  %23 = vsyncmov [#allocation2]
  %s24 = vpop.sfrf %23
  %p25 = scmp.eq.s32.totalorder %s24, 0
  %p26 = pneg %p25
  %28 = shalt.err (%p26)

</llo_original>
